<compile_context>
chip_gen: v7x
topology: tpu7x:2x2x1
jax: 0.10.0
libtpu: 0.0.40
codegen_flags: <defaults>
</compile_context>

<pallas_src>
import functools

import jax
import jax.numpy as jnp
from jax.experimental import pallas as pl
from jax.experimental.pallas import tpu as pltpu


_COMPUTE_DTYPE = jnp.bfloat16   # streaming / MXU dtype; accumulation stays f32


# ----------------------------- Pallas kernel -------------------------------
def _fused_q_kernel(o_ref, a_ref, w1o_ref, w1a_ref, b1_ref,
                    w2_ref, b2_ref, w3_ref, b3_ref, out_ref):
    # Layer 1 for BOTH heads at once (weights packed along the output axis).
    # The concat([o, a]) of the reference is replaced by a split-weight sum.
    h1 = (jnp.dot(o_ref[...], w1o_ref[...], preferred_element_type=jnp.float32)
          + jnp.dot(a_ref[...], w1a_ref[...], preferred_element_type=jnp.float32)
          + b1_ref[...])
    h1 = jnp.maximum(h1, 0.0).astype(w2_ref.dtype)

    # Layer 2: ONE block-diagonal (2H, 2H) dot covering both heads.  2H = 64 is
    # within a single MXU pass, so the zero off-diagonal blocks cost nothing,
    # and there are no intra-tile lane slices at column H.
    h2 = jnp.maximum(
        jnp.dot(h1, w2_ref[...], preferred_element_type=jnp.float32) + b2_ref[...],
        0.0).astype(w3_ref.dtype)

    # Layer 3: ONE (2H, 2) dot; each head's weight column is zero on the other
    # head's rows, so q1/q2 land in separate lanes of one (tile_b, 2) slab.
    q = jnp.dot(h2, w3_ref[...], preferred_element_type=jnp.float32) + b3_ref[...]
    out_ref[...] = q.astype(out_ref.dtype)


# ------------------------------ kernel wrapper ------------------------------
def _round_up(x, m):
    return ((x + m - 1) // m) * m


def _choose_tile_b(B, cap=2048):
    # Small batches: one full-batch block (block dim == array dim is always a
    # legal TPU block shape), negligible VMEM.
    if B <= 256:
        return B
    # Larger batches: tile is a multiple of 8 sublanes, at least 2 grid steps
    # (keeps both v7x TensorCores busy under "parallel" semantics), capped so
    # double-buffered o/a tiles stay far below every generation's scoped-VMEM
    # default (v5e: 16 MiB) — at tile_b=2048 the per-step footprint is < 1 MiB.
    half = _round_up((B + 1) // 2, 8)
    return min(cap, half)


def _fused_q_forward(o, a, packed):
    w1o, w1a, b1, w2, b2, w3, b3 = packed
    B, obs_dim = o.shape
    act_dim = a.shape[1]
    tile_b = _choose_tile_b(B)
    grid = (pl.cdiv(B, tile_b),)

    # Stream activations in bf16 (halves the only B-scaling HBM traffic).
    o = o.astype(_COMPUTE_DTYPE)
    a = a.astype(_COMPUTE_DTYPE)

    def batch_spec(feat):
        return pl.BlockSpec((tile_b, feat), lambda i: (i, 0))

    def const_spec(arr):
        # Whole array, same block every grid step -> stays VMEM-resident.
        return pl.BlockSpec(arr.shape, lambda i, _n=arr.ndim: (0,) * _n)

    return pl.pallas_call(
        _fused_q_kernel,
        out_shape=jax.ShapeDtypeStruct((B, 2), jnp.float32),
        grid=grid,
        in_specs=[batch_spec(obs_dim), batch_spec(act_dim),
                  const_spec(w1o), const_spec(w1a), const_spec(b1),
                  const_spec(w2), const_spec(b2), const_spec(w3), const_spec(b3)],
        out_specs=pl.BlockSpec((tile_b, 2), lambda i: (i, 0)),
        compiler_params=pltpu.CompilerParams(
            dimension_semantics=("parallel",)),
    )(o, a, w1o, w1a, b1, w2, b2, w3, b3)


# --------------------------- parameter creation -----------------------------
def _xavier_uniform(key, fan_in, fan_out, gain=1.0):
    bound = gain * jnp.sqrt(6.0 / (fan_in + fan_out))
    return jax.random.uniform(
        key, (fan_in, fan_out), dtype=jnp.float32, minval=-bound, maxval=bound)


def _make_q_params(key, in_dim, hidden_dim, out_dim=1):
    keys = jax.random.split(key, 6)
    w1 = _xavier_uniform(keys[0], in_dim, hidden_dim)
    b1 = jax.random.uniform(keys[1], (1, hidden_dim), dtype=jnp.float32)  # U(0,1)
    w2 = _xavier_uniform(keys[2], hidden_dim, hidden_dim)
    b2 = jax.random.uniform(keys[3], (1, hidden_dim), dtype=jnp.float32)
    w3 = _xavier_uniform(keys[4], hidden_dim, out_dim)
    b3 = jax.random.uniform(keys[5], (1, out_dim), dtype=jnp.float32)
    return (w1, b1, w2, b2, w3, b3)


def _pack_params(p1, p2, obs_dim):
    """Pack both Q-heads for the fused kernel (done once, at init time)."""
    w1_1, b1_1, w2_1, b2_1, w3_1, b3_1 = p1
    w1_2, b1_2, w2_2, b2_2, w3_2, b3_2 = p2
    H = w2_1.shape[0]

    # Layer 1: both heads along the output axis, then split by input (obs/act)
    # so the kernel never materializes concat([o, a]).
    w1_all = jnp.concatenate([w1_1, w1_2], axis=1)            # (in, 2H)
    w1o = w1_all[:obs_dim]                                     # (obs_dim, 2H)
    w1a = w1_all[obs_dim:]                                     # (act_dim, 2H)
    b1 = jnp.concatenate([b1_1, b1_2], axis=1)                 # (1, 2H)

    # Layer 2: single block-diagonal weight -> one MXU dot for both heads.
    zHH = jnp.zeros((H, H), dtype=w2_1.dtype)
    w2 = jnp.concatenate(
        [jnp.concatenate([w2_1, zHH], axis=1),
         jnp.concatenate([zHH, w2_2], axis=1)], axis=0)        # (2H, 2H)
    b2 = jnp.concatenate([b2_1, b2_2], axis=1)                 # (1, 2H)

    # Layer 3: single (2H, 2) weight; each head's column is zero on the other
    # head's rows so the heads write disjoint output lanes.
    zH1 = jnp.zeros_like(w3_1)                                 # (H, 1)
    w3 = jnp.concatenate(
        [jnp.concatenate([w3_1, zH1], axis=1),
         jnp.concatenate([zH1, w3_2], axis=1)], axis=0)        # (2H, 2)
    b3 = jnp.concatenate([b3_1, b3_2], axis=1)                 # (1, 2)

    # Weights in bf16 (native MXU dtype, resident in VMEM); biases stay f32
    # because they are added to the f32 accumulators.
    cast = lambda w: w.astype(_COMPUTE_DTYPE)
    return (cast(w1o), cast(w1a), b1, cast(w2), b2, cast(w3), b3)


# ------------------------------ module wrapper ------------------------------
class SoftQFunctionPallas:
    """JAX/Pallas equivalent of SoftQFunction (forward pass only)."""

    def __init__(self, obs_dim, act_dim, hidden_dim, seed=0):
        key = jax.random.PRNGKey(seed)
        k1, k2 = jax.random.split(key)
        in_dim = obs_dim + act_dim
        self.obs_dim = obs_dim
        self.act_dim = act_dim
        self.q1_params = _make_q_params(k1, in_dim, hidden_dim)
        self.q2_params = _make_q_params(k2, in_dim, hidden_dim)
        self.packed_params = _pack_params(self.q1_params, self.q2_params, obs_dim)

    @functools.partial(jax.jit, static_argnums=0)
    def __call__(self, o, a):
        out = _fused_q_forward(o, a, self.packed_params)   # (B, 2) lane-dense
        return (out[:, 0:1], out[:, 1:2])                  # (q1, q2), each (B, 1)


# ------------------------------ pure-JAX references --------------------------
def _reference_forward_f32(o, a, p1, p2):
    """Full-f32 reference (matches the PyTorch module up to FMA order)."""
    x = jnp.concatenate([o, a], axis=-1)

    def mlp(x, p):
        w1, b1, w2, b2, w3, b3 = p
        h = jnp.maximum(x @ w1 + b1, 0.0)
        h = jnp.maximum(h @ w2 + b2, 0.0)
        return h @ w3 + b3

    return mlp(x, p1), mlp(x, p2)


def _reference_forward_packed(o, a, packed):
    """Same math/dtypes as the kernel (bf16 operands, f32 accumulation)."""
    w1o, w1a, b1, w2, b2, w3, b3 = packed
    oc = o.astype(_COMPUTE_DTYPE)
    ac = a.astype(_COMPUTE_DTYPE)
    h1 = jnp.maximum(
        jnp.dot(oc, w1o, preferred_element_type=jnp.float32)
        + jnp.dot(ac, w1a, preferred_element_type=jnp.float32) + b1, 0.0)
    h1 = h1.astype(_COMPUTE_DTYPE)
    h2 = jnp.maximum(
        jnp.dot(h1, w2, preferred_element_type=jnp.float32) + b2, 0.0)
    h2 = h2.astype(_COMPUTE_DTYPE)
    return jnp.dot(h2, w3, preferred_element_type=jnp.float32) + b3   # (B, 2)


# ---------------------------------- main ------------------------------------
if __name__ == "__main__":
    B, OBS_DIM, ACT_DIM, HIDDEN = 8, 24, 8, 32

    key = jax.random.PRNGKey(0)
    ko, ka = jax.random.split(key)
    o = jax.random.normal(ko, (B, OBS_DIM), dtype=jnp.float32)
    a = jax.random.normal(ka, (B, ACT_DIM), dtype=jnp.float32)

    qfn = SoftQFunctionPallas(OBS_DIM, ACT_DIM, HIDDEN, seed=0)
    q1, q2 = qfn(o, a)
    jax.block_until_ready((q1, q2))

    assert q1.shape == (B, 1) and q2.shape == (B, 1)

    # Exact-math check against a pure-JAX model using identical bf16 casts.
    ref_packed = _reference_forward_packed(o, a, qfn.packed_params)
    assert jnp.allclose(q1, ref_packed[:, 0:1], atol=1e-3, rtol=1e-3)
    assert jnp.allclose(q2, ref_packed[:, 1:2], atol=1e-3, rtol=1e-3)

    # Looser check against the full-f32 reference (bf16 streaming precision).
    r1, r2 = _reference_forward_f32(o, a, qfn.q1_params, qfn.q2_params)
    assert jnp.allclose(q1, r1, atol=5e-2, rtol=5e-2)
    assert jnp.allclose(q2, r2, atol=5e-2, rtol=5e-2)

    print("KERNEL_OK")
</pallas_src>

<mosaic_0001>
module attributes {stable_mosaic.version = 11 : i64} {
  func.func @_fused_q_kernel(%arg0: i32, %arg1: memref<8x24xbf16, #tpu.memory_space<vmem>>, %arg2: memref<8x8xbf16, #tpu.memory_space<vmem>>, %arg3: memref<24x64xbf16, #tpu.memory_space<vmem>>, %arg4: memref<8x64xbf16, #tpu.memory_space<vmem>>, %arg5: memref<1x64xf32, #tpu.memory_space<vmem>>, %arg6: memref<64x64xbf16, #tpu.memory_space<vmem>>, %arg7: memref<1x64xf32, #tpu.memory_space<vmem>>, %arg8: memref<64x2xbf16, #tpu.memory_space<vmem>>, %arg9: memref<1x2xf32, #tpu.memory_space<vmem>>, %arg10: memref<8x2xf32, #tpu.memory_space<vmem>>) attributes {dimension_semantics = [#tpu.dimension_semantics<parallel>], iteration_bounds = array<i64: 1>, scalar_prefetch = 0 : i64, scratch_operands = 0 : i64, tpu.core_type = #tpu.core_type<tc>, window_params = [{transform_indices = @transform_0, window_bounds = array<i64: 8, 24>}, {transform_indices = @transform_1, window_bounds = array<i64: 8, 8>}, {pipeline_mode = #tpu.pipeline_mode<synchronous>, transform_indices = @transform_2, window_bounds = array<i64: 24, 64>}, {pipeline_mode = #tpu.pipeline_mode<synchronous>, transform_indices = @transform_3, window_bounds = array<i64: 8, 64>}, {pipeline_mode = #tpu.pipeline_mode<synchronous>, transform_indices = @transform_4, window_bounds = array<i64: 1, 64>}, {pipeline_mode = #tpu.pipeline_mode<synchronous>, transform_indices = @transform_5, window_bounds = array<i64: 64, 64>}, {pipeline_mode = #tpu.pipeline_mode<synchronous>, transform_indices = @transform_6, window_bounds = array<i64: 1, 64>}, {pipeline_mode = #tpu.pipeline_mode<synchronous>, transform_indices = @transform_7, window_bounds = array<i64: 64, 2>}, {pipeline_mode = #tpu.pipeline_mode<synchronous>, transform_indices = @transform_8, window_bounds = array<i64: 1, 2>}, {transform_indices = @transform_9, window_bounds = array<i64: 8, 2>}]} {
    %c0 = arith.constant 0 : index
    %c0_0 = arith.constant 0 : index
    %0 = vector.load %arg1[%c0, %c0_0] : memref<8x24xbf16, #tpu.memory_space<vmem>>, vector<8x24xbf16>
    %c0_1 = arith.constant 0 : index
    %c0_2 = arith.constant 0 : index
    %1 = vector.load %arg3[%c0_1, %c0_2] : memref<24x64xbf16, #tpu.memory_space<vmem>>, vector<24x64xbf16>
    %cst = arith.constant dense<0.000000e+00> : vector<8x64xf32>
    %2 = tpu.matmul %0, %1, %cst {dimension_numbers = #tpu.dot_dimension_numbers<[1], [0], [0], [1], [0, 0, 1, 1], [], []>} : vector<8x24xbf16>, vector<24x64xbf16>, vector<8x64xf32> -> vector<8x64xf32>
    %c0_3 = arith.constant 0 : index
    %c0_4 = arith.constant 0 : index
    %3 = vector.load %arg2[%c0_3, %c0_4] : memref<8x8xbf16, #tpu.memory_space<vmem>>, vector<8x8xbf16>
    %c0_5 = arith.constant 0 : index
    %c0_6 = arith.constant 0 : index
    %4 = vector.load %arg4[%c0_5, %c0_6] : memref<8x64xbf16, #tpu.memory_space<vmem>>, vector<8x64xbf16>
    %cst_7 = arith.constant dense<0.000000e+00> : vector<8x64xf32>
    %5 = tpu.matmul %3, %4, %cst_7 {dimension_numbers = #tpu.dot_dimension_numbers<[1], [0], [0], [1], [0, 0, 1, 1], [], []>} : vector<8x8xbf16>, vector<8x64xbf16>, vector<8x64xf32> -> vector<8x64xf32>
    %6 = arith.addf %2, %5 : vector<8x64xf32>
    %c0_8 = arith.constant 0 : index
    %c0_9 = arith.constant 0 : index
    %7 = vector.load %arg5[%c0_8, %c0_9] : memref<1x64xf32, #tpu.memory_space<vmem>>, vector<1x64xf32>
    %8 = vector.broadcast %7 : vector<1x64xf32> to vector<8x64xf32>
    %9 = arith.addf %6, %8 : vector<8x64xf32>
    %cst_10 = arith.constant 0.000000e+00 : f32
    %10 = vector.broadcast %cst_10 : f32 to vector<8x64xf32>
    %11 = arith.maximumf %9, %10 : vector<8x64xf32>
    %12 = arith.truncf %11 : vector<8x64xf32> to vector<8x64xbf16>
    %c0_11 = arith.constant 0 : index
    %c0_12 = arith.constant 0 : index
    %13 = vector.load %arg6[%c0_11, %c0_12] : memref<64x64xbf16, #tpu.memory_space<vmem>>, vector<64x64xbf16>
    %cst_13 = arith.constant dense<0.000000e+00> : vector<8x64xf32>
    %14 = tpu.matmul %12, %13, %cst_13 {dimension_numbers = #tpu.dot_dimension_numbers<[1], [0], [0], [1], [0, 0, 1, 1], [], []>} : vector<8x64xbf16>, vector<64x64xbf16>, vector<8x64xf32> -> vector<8x64xf32>
    %c0_14 = arith.constant 0 : index
    %c0_15 = arith.constant 0 : index
    %15 = vector.load %arg7[%c0_14, %c0_15] : memref<1x64xf32, #tpu.memory_space<vmem>>, vector<1x64xf32>
    %16 = vector.broadcast %15 : vector<1x64xf32> to vector<8x64xf32>
    %17 = arith.addf %14, %16 : vector<8x64xf32>
    %cst_16 = arith.constant 0.000000e+00 : f32
    %18 = vector.broadcast %cst_16 : f32 to vector<8x64xf32>
    %19 = arith.maximumf %17, %18 : vector<8x64xf32>
    %20 = arith.truncf %19 : vector<8x64xf32> to vector<8x64xbf16>
    %c0_17 = arith.constant 0 : index
    %c0_18 = arith.constant 0 : index
    %21 = vector.load %arg8[%c0_17, %c0_18] : memref<64x2xbf16, #tpu.memory_space<vmem>>, vector<64x2xbf16>
    %cst_19 = arith.constant dense<0.000000e+00> : vector<8x2xf32>
    %22 = tpu.matmul %20, %21, %cst_19 {dimension_numbers = #tpu.dot_dimension_numbers<[1], [0], [0], [1], [0, 0, 1, 1], [], []>} : vector<8x64xbf16>, vector<64x2xbf16>, vector<8x2xf32> -> vector<8x2xf32>
    %c0_20 = arith.constant 0 : index
    %c0_21 = arith.constant 0 : index
    %23 = vector.load %arg9[%c0_20, %c0_21] : memref<1x2xf32, #tpu.memory_space<vmem>>, vector<1x2xf32>
    %24 = vector.broadcast %23 : vector<1x2xf32> to vector<8x2xf32>
    %25 = arith.addf %22, %24 : vector<8x2xf32>
    %c0_22 = arith.constant 0 : index
    %c0_23 = arith.constant 0 : index
    %26 = vector.load %arg10[%c0_22, %c0_23] : memref<8x2xf32, #tpu.memory_space<vmem>>, vector<8x2xf32>
    tpu.vector_store %arg10[%c0_22, %c0_23], %25 {strides = array<i32>} : memref<8x2xf32, #tpu.memory_space<vmem>>, vector<8x2xf32>,
    return
  }
  func.func @transform_0(%arg0: i32) -> (i32, i32) {
    %c0_i32 = arith.constant 0 : i32
    %c0_i32_0 = arith.constant 0 : i32
    return %arg0, %c0_i32 : i32, i32
  }
  func.func @transform_1(%arg0: i32) -> (i32, i32) {
    %c0_i32 = arith.constant 0 : i32
    %c0_i32_0 = arith.constant 0 : i32
    return %arg0, %c0_i32 : i32, i32
  }
  func.func @transform_2(%arg0: i32) -> (i32, i32) {
    %c0_i32 = arith.constant 0 : i32
    %c0_i32_0 = arith.constant 0 : i32
    %c0_i32_1 = arith.constant 0 : i32
    return %c0_i32, %c0_i32_0 : i32, i32
  }
  func.func @transform_3(%arg0: i32) -> (i32, i32) {
    %c0_i32 = arith.constant 0 : i32
    %c0_i32_0 = arith.constant 0 : i32
    %c0_i32_1 = arith.constant 0 : i32
    return %c0_i32, %c0_i32_0 : i32, i32
  }
  func.func @transform_4(%arg0: i32) -> (i32, i32) {
    %c0_i32 = arith.constant 0 : i32
    %c0_i32_0 = arith.constant 0 : i32
    %c0_i32_1 = arith.constant 0 : i32
    return %c0_i32, %c0_i32_0 : i32, i32
  }
  func.func @transform_5(%arg0: i32) -> (i32, i32) {
    %c0_i32 = arith.constant 0 : i32
    %c0_i32_0 = arith.constant 0 : i32
    %c0_i32_1 = arith.constant 0 : i32
    return %c0_i32, %c0_i32_0 : i32, i32
  }
  func.func @transform_6(%arg0: i32) -> (i32, i32) {
    %c0_i32 = arith.constant 0 : i32
    %c0_i32_0 = arith.constant 0 : i32
    %c0_i32_1 = arith.constant 0 : i32
    return %c0_i32, %c0_i32_0 : i32, i32
  }
  func.func @transform_7(%arg0: i32) -> (i32, i32) {
    %c0_i32 = arith.constant 0 : i32
    %c0_i32_0 = arith.constant 0 : i32
    %c0_i32_1 = arith.constant 0 : i32
    return %c0_i32, %c0_i32_0 : i32, i32
  }
  func.func @transform_8(%arg0: i32) -> (i32, i32) {
    %c0_i32 = arith.constant 0 : i32
    %c0_i32_0 = arith.constant 0 : i32
    %c0_i32_1 = arith.constant 0 : i32
    return %c0_i32, %c0_i32_0 : i32, i32
  }
  func.func @transform_9(%arg0: i32) -> (i32, i32) {
    %c0_i32 = arith.constant 0 : i32
    %c0_i32_0 = arith.constant 0 : i32
    return %arg0, %c0_i32 : i32, i32
  }
}

</mosaic_0001>

<llo_original>
// kernel: a_call__.1
$region0: #{a_call__.1}
  #allocation0 [shape = 'u32[]', space=smem, size = 0x4, offset = 0x4, fixed_abs, tag = 'smem constant byte address 0x4 - core index']
  #allocation1 [shape = 'u32[144,128]{1,0:T(1,128)}', space=vmem, size = 0x12000, scoped, tag = 'internal scratch']
  %s0 = inlined_call_operand.vmem [shape: bf16[8,24], index: 0, kind: input, shape index: {}]
  %s1 = inlined_call_operand.vmem [shape: bf16[8,8], index: 1, kind: input, shape index: {}]
  %s2 = inlined_call_operand.vmem [shape: bf16[24,64], index: 2, kind: input, shape index: {}]
  %s3 = inlined_call_operand.vmem [shape: bf16[8,64], index: 3, kind: input, shape index: {}]
  %s4 = inlined_call_operand.vmem [shape: f32[1,64], index: 4, kind: input, shape index: {}]
  %s5 = inlined_call_operand.hbm [shape: bf16[64,64], index: 5, kind: input, shape index: {}]
  %s6 = inlined_call_operand.vmem [shape: f32[1,64], index: 6, kind: input, shape index: {}]
  %s7 = inlined_call_operand.vmem [shape: bf16[64,2], index: 7, kind: input, shape index: {}]
  %s8 = inlined_call_operand.vmem [shape: f32[1,2], index: 8, kind: input, shape index: {}]
  %s9 = inlined_call_operand.vmem [shape: f32[8,2], index: 9, kind: output, shape index: {}]
  %s10 = sld [smem:[#allocation0]]
  $region50: #{a_call__.1} parent=0
    _
  %s12 = ssub.s32 1, %s10
  %s13 = scalar_select 0, %s12, %s10
  $region1: #{a_call__.1} parent=0
    #allocation2 [shape = 'u8[16384]{0}', space=vmem, size = 0x4000, scoped, tag = 'input window, operand 5, single buffered']
    #allocation3 [shape = 's32[1]{0}', space=sflag, size = 0x4, scoped, tag = 'scoped memory for a_call__.1']
    %14 = vsyncpa [#allocation3], 0
    // Predicated region
    $region2: #{a_call__.1} parent=1 // pred_check
      _
    $region3: #{a_call__.1} parent=1 // pred_check_branch
      %16 = sbr.rel (0) target = $region5
    $region4: #{a_call__.1} parent=1 // pred_region
      _
    $region5: #{a_call__.1} parent=1 // pred_fallthru
      _
    // Predicated region
    $region6: #{a_call__.1} parent=1 // pred_check
      _
    $region7: #{a_call__.1} parent=1 // pred_check_branch
      %18 = sbr.rel (0) target = $region9
    $region8: #{a_call__.1} parent=1 // pred_region
      _
    $region9: #{a_call__.1} parent=1 // pred_fallthru
      _
    // Predicated region
    $region10: #{a_call__.1} parent=1 // pred_check
      _
    $region11: #{a_call__.1} parent=1 // pred_check_branch
      %20 = sbr.rel (0) target = $region13
    $region12: #{a_call__.1} parent=1 // pred_region
      _
    $region13: #{a_call__.1} parent=1 // pred_fallthru
      _
    // Predicated region
    $region14: #{a_call__.1} parent=1 // pred_check
      _
    $region15: #{a_call__.1} parent=1 // pred_check_branch
      %22 = sbr.rel (0) target = $region17
    $region16: #{a_call__.1} parent=1 // pred_region
      _
    $region17: #{a_call__.1} parent=1 // pred_fallthru
      _
    // Predicated region
    $region18: #{a_call__.1} parent=1 // pred_check
      _
    $region19: #{a_call__.1} parent=1 // pred_check_branch
      %24 = sbr.rel (0) target = $region21
    $region20: #{a_call__.1} parent=1 // pred_region
      _
    $region21: #{a_call__.1} parent=1 // pred_fallthru
      _
    // Predicated region
    $region22: #{a_call__.1} parent=1 // pred_check
      _
    $region23: #{a_call__.1} parent=1 // pred_check_branch
      %26 = sbr.rel (0) target = $region25
    $region24: #{a_call__.1} parent=1 // pred_region
      %s28 = ssub.s32 512, 512
      %29 = vsyncadd [#allocation3], %s28
      %s30 = sshll.u32 [#allocation2], 4
      %s31 = int_to_ptr.vmem [resolvable:$true] %s30
      %36 = dma.hbm_to_vmem [thread:$0]  %s5, 512, %s31, [#allocation3], 64, 64, 4
    $region25: #{a_call__.1} parent=1 // pred_fallthru
      _
    // Predicated region
    $region26: #{a_call__.1} parent=1 // pred_check
      _
    $region27: #{a_call__.1} parent=1 // pred_check_branch
      %38 = sbr.rel (0) target = $region29
    $region28: #{a_call__.1} parent=1 // pred_region
      _
    $region29: #{a_call__.1} parent=1 // pred_fallthru
      _
    // Predicated region
    $region30: #{a_call__.1} parent=1 // pred_check
      _
    $region31: #{a_call__.1} parent=1 // pred_check_branch
      %40 = sbr.rel (0) target = $region33
    $region32: #{a_call__.1} parent=1 // pred_region
      _
    $region33: #{a_call__.1} parent=1 // pred_fallthru
      _
    // Predicated region
    $region34: #{a_call__.1} parent=1 // pred_check
      _
    $region35: #{a_call__.1} parent=1 // pred_check_branch
      %42 = sbr.rel (0) target = $region37
    $region36: #{a_call__.1} parent=1 // pred_region
      _
    $region37: #{a_call__.1} parent=1 // pred_fallthru
      _
    // Predicated region
    $region38: #{a_call__.1} parent=1 // pred_check
      _
    $region39: #{a_call__.1} parent=1 // pred_check_branch
      %44 = sbr.rel (0) target = $region41
    $region40: #{a_call__.1} parent=1 // pred_region
      %45 = dma.done [#allocation3], 512
    $region41: #{a_call__.1} parent=1 // pred_fallthru
      _
    %v47 = vld [vmem:[%s0] sm:$0xf]
    %v48 = vld [vmem:[%s2] sm:$0xf]
    %v49 = vld [vmem:[%s2 + $0x4] sm:$0xf]
    %v50 = vld [vmem:[%s2 + $0x8] sm:$0xf]
    %v51 = vld [vmem:[%s1] sm:$0xf]
    %v52 = vld [vmem:[%s3] sm:$0xf]
    %vm53 = vcmask 64512
    %v55 = vsel %vm53, %v51, 0
    %vm57 = vcmask 1043456
    %v59 = vsel %vm57, %v52, 0
    %61 = vmatprep.subr.bf16.mxu0 0
    %62 = vmatpush1.bf16.msra.mxu0 %v59
    %63 = vmatprep.subr.bf16.mxu0 0
    %64 = vmatpush1.bf16.msra.mxu0 0
    %65 = vmatprep.subr.bf16.mxu0 0
    %66 = vmatpush1.bf16.msra.mxu0 0
    %67 = vmatprep.subr.bf16.mxu0 0
    %68 = vmatpush1.bf16.msra.mxu0 0
    %69 = vmatprep.subr.bf16.mxu0 0
    %70 = vmatpush1.bf16.msra.mxu0 0
    %71 = vmatprep.subr.bf16.mxu0 0
    %72 = vmatpush1.bf16.msra.mxu0 0
    %73 = vmatprep.subr.bf16.mxu0 0
    %74 = vmatpush1.bf16.msra.mxu0 0
    %75 = vmatprep.subr.bf16.mxu0 0
    %76 = vmatpush1.bf16.msra.mxu0 0
    %77 = vmatprep.subr.bf16.mxu0 0
    %78 = vmatpush1.bf16.msra.mxu0 0
    %79 = vmatprep.subr.bf16.mxu0 0
    %80 = vmatpush1.bf16.msra.mxu0 0
    %81 = vmatprep.subr.bf16.mxu0 0
    %82 = vmatpush1.bf16.msra.mxu0 0
    %83 = vmatprep.subr.bf16.mxu0 0
    %84 = vmatpush1.bf16.msra.mxu0 0
    %85 = vmatprep.subr.bf16.mxu0 0
    %86 = vmatpush1.bf16.msra.mxu0 0
    %87 = vmatprep.subr.bf16.mxu0 0
    %88 = vmatpush1.bf16.msra.mxu0 0
    %89 = vmatprep.subr.bf16.mxu0 0
    %90 = vmatpush1.bf16.msra.mxu0 0
    %91 = vmatprep.subr.bf16.mxu0 0
    %92 = vmatpush1.bf16.msra.mxu0 0
    %93 = vmatprep.mubr.bf16.mxu0 0
    %94 = vmatmul.mubr.bf16.gmra.mrb[0].mxu0 %v55
    %v95 = vpop.f32.mrb[0].mxu0
    %v96 = vadd.f32 0.0, %v95
    %v97 = vpop.f32.mrb[0].mxu0
    %v98 = vpop.f32.mrb[0].mxu0
    %v99 = vpop.f32.mrb[0].mxu0
    %100 = vdwg.mxu0
    %v104 = vunpack.c.l.b16 %v48
    %v105 = vunpack.c.l.b16 %v49
    %v106 = vunpack.c.l.b16 %v50
    %v107 = vpack.c.b16 %v105, %v104
    %v108 = vpack.c.b16 %v106, %v106
    %vm110 = vcmask 195584
    %v112 = vsel %vm110, %v47, 0
    %v115 = vsel %vm57, %v108, 0
    %117 = vmatprep.subr.bf16.mxu0 0
    %118 = vmatpush1.bf16.msra.mxu0 %v107
    %119 = vmatprep.subr.bf16.mxu0 0
    %120 = vmatpush1.bf16.msra.mxu0 %v115
    %121 = vmatprep.subr.bf16.mxu0 0
    %122 = vmatpush1.bf16.msra.mxu0 0
    %123 = vmatprep.subr.bf16.mxu0 0
    %124 = vmatpush1.bf16.msra.mxu0 0
    %125 = vmatprep.subr.bf16.mxu0 0
    %126 = vmatpush1.bf16.msra.mxu0 0
    %127 = vmatprep.subr.bf16.mxu0 0
    %128 = vmatpush1.bf16.msra.mxu0 0
    %129 = vmatprep.subr.bf16.mxu0 0
    %130 = vmatpush1.bf16.msra.mxu0 0
    %131 = vmatprep.subr.bf16.mxu0 0
    %132 = vmatpush1.bf16.msra.mxu0 0
    %133 = vmatprep.subr.bf16.mxu0 0
    %134 = vmatpush1.bf16.msra.mxu0 0
    %135 = vmatprep.subr.bf16.mxu0 0
    %136 = vmatpush1.bf16.msra.mxu0 0
    %137 = vmatprep.subr.bf16.mxu0 0
    %138 = vmatpush1.bf16.msra.mxu0 0
    %139 = vmatprep.subr.bf16.mxu0 0
    %140 = vmatpush1.bf16.msra.mxu0 0
    %141 = vmatprep.subr.bf16.mxu0 0
    %142 = vmatpush1.bf16.msra.mxu0 0
    %143 = vmatprep.subr.bf16.mxu0 0
    %144 = vmatpush1.bf16.msra.mxu0 0
    %145 = vmatprep.subr.bf16.mxu0 0
    %146 = vmatpush1.bf16.msra.mxu0 0
    %147 = vmatprep.subr.bf16.mxu0 0
    %148 = vmatpush1.bf16.msra.mxu0 0
    %149 = vmatprep.mubr.bf16.mxu0 0
    %150 = vmatmul.mubr.bf16.gmra.mrb[0].mxu0 %v112
    %v151 = vpop.f32.mrb[0].mxu0
    %v152 = vadd.f32 %v96, %v151
    %v153 = vpop.f32.mrb[0].mxu0
    %v154 = vpop.f32.mrb[0].mxu0
    %v155 = vpop.f32.mrb[0].mxu0
    %156 = vdwg.mxu0
    %v157 = vld [vmem:[%s4] sm:$0x1]
    %v159 = vlaneseq
    %v160 = vshrl.u32 %v159, 7
    %v161 = vsub.s32 0, %v160
    %v162 = vrot.slane %v157, %v161
    %v164 = vadd.f32 %v152, %v162
    %v165 = vmax.f32 %v164, 0.0
    %v166 = vpack.c.bf16 %v165, %v165
    %v167 = vld [vmem:[#allocation2] sm:$0xf]
    %v168 = vld [vmem:[#allocation2 + $0x4] sm:$0xf]
    %v169 = vld [vmem:[#allocation2 + $0x8] sm:$0xf]
    %v170 = vld [vmem:[#allocation2 + $0xc] sm:$0xf]
    %v171 = vld [vmem:[#allocation2 + $0x10] sm:$0xf]
    %v172 = vld [vmem:[#allocation2 + $0x14] sm:$0xf]
    %v173 = vld [vmem:[#allocation2 + $0x18] sm:$0xf]
    %v174 = vld [vmem:[#allocation2 + $0x1c] sm:$0xf]
    %v175 = vld [vmem:[%s6] sm:$0x1]
    %v177 = vlaneseq
    %v178 = vshrl.u32 %v177, 7
    %v179 = vsub.s32 0, %v178
    %v180 = vrot.slane %v175, %v179
    %v190 = vunpack.c.l.b16 %v167
    %v191 = vunpack.c.l.b16 %v168
    %v192 = vunpack.c.l.b16 %v169
    %v193 = vunpack.c.l.b16 %v170
    %v194 = vunpack.c.l.b16 %v171
    %v195 = vunpack.c.l.b16 %v172
    %v196 = vunpack.c.l.b16 %v173
    %v197 = vunpack.c.l.b16 %v174
    %v198 = vpack.c.b16 %v191, %v190
    %v199 = vpack.c.b16 %v193, %v192
    %v200 = vpack.c.b16 %v195, %v194
    %v201 = vpack.c.b16 %v197, %v196
    %vm206 = vcmask 523264
    %v208 = vsel %vm206, %v166, 0
    %210 = vmatprep.subr.bf16.mxu0 0
    %211 = vmatpush1.bf16.msra.mxu0 %v198
    %212 = vmatprep.subr.bf16.mxu0 0
    %213 = vmatpush1.bf16.msra.mxu0 %v199
    %214 = vmatprep.subr.bf16.mxu0 0
    %215 = vmatpush1.bf16.msra.mxu0 %v200
    %216 = vmatprep.subr.bf16.mxu0 0
    %217 = vmatpush1.bf16.msra.mxu0 %v201
    %218 = vmatprep.subr.bf16.mxu0 0
    %219 = vmatpush1.bf16.msra.mxu0 0
    %220 = vmatprep.subr.bf16.mxu0 0
    %221 = vmatpush1.bf16.msra.mxu0 0
    %222 = vmatprep.subr.bf16.mxu0 0
    %223 = vmatpush1.bf16.msra.mxu0 0
    %224 = vmatprep.subr.bf16.mxu0 0
    %225 = vmatpush1.bf16.msra.mxu0 0
    %226 = vmatprep.subr.bf16.mxu0 0
    %227 = vmatpush1.bf16.msra.mxu0 0
    %228 = vmatprep.subr.bf16.mxu0 0
    %229 = vmatpush1.bf16.msra.mxu0 0
    %230 = vmatprep.subr.bf16.mxu0 0
    %231 = vmatpush1.bf16.msra.mxu0 0
    %232 = vmatprep.subr.bf16.mxu0 0
    %233 = vmatpush1.bf16.msra.mxu0 0
    %234 = vmatprep.subr.bf16.mxu0 0
    %235 = vmatpush1.bf16.msra.mxu0 0
    %236 = vmatprep.subr.bf16.mxu0 0
    %237 = vmatpush1.bf16.msra.mxu0 0
    %238 = vmatprep.subr.bf16.mxu0 0
    %239 = vmatpush1.bf16.msra.mxu0 0
    %240 = vmatprep.subr.bf16.mxu0 0
    %241 = vmatpush1.bf16.msra.mxu0 0
    %242 = vmatprep.mubr.bf16.mxu0 0
    %243 = vmatmul.mubr.bf16.gmra.mrb[0].mxu0 %v208
    %v244 = vpop.f32.mrb[0].mxu0
    %v245 = vadd.f32 %v180, %v244
    %v246 = vpop.f32.mrb[0].mxu0
    %v247 = vpop.f32.mrb[0].mxu0
    %v248 = vpop.f32.mrb[0].mxu0
    %249 = vdwg.mxu0
    %v250 = vmax.f32 %v245, 0.0
    %v251 = vpack.c.bf16 %v250, %v250
    %v252 = vld [vmem:[%s7] sm:$0xf]
    %v253 = vld [vmem:[%s7 + $0x4] sm:$0xf]
    %v254 = vld [vmem:[%s7 + $0x8] sm:$0xf]
    %v255 = vld [vmem:[%s7 + $0xc] sm:$0xf]
    %v256 = vld [vmem:[%s7 + $0x10] sm:$0xf]
    %v257 = vld [vmem:[%s7 + $0x14] sm:$0xf]
    %v258 = vld [vmem:[%s7 + $0x18] sm:$0xf]
    %v259 = vld [vmem:[%s7 + $0x1c] sm:$0xf]
    %v260 = vld [vmem:[%s8] sm:$0x1]
    %v262 = vlaneseq
    %v263 = vshrl.u32 %v262, 7
    %v264 = vsub.s32 0, %v263
    %v265 = vrot.slane %v260, %v264
    %v275 = vunpack.c.l.b16 %v252
    %v276 = vunpack.c.l.b16 %v253
    %v277 = vunpack.c.l.b16 %v254
    %v278 = vunpack.c.l.b16 %v255
    %v279 = vunpack.c.l.b16 %v256
    %v280 = vunpack.c.l.b16 %v257
    %v281 = vunpack.c.l.b16 %v258
    %v282 = vunpack.c.l.b16 %v259
    %v283 = vpack.c.b16 %v276, %v275
    %v284 = vpack.c.b16 %v278, %v277
    %v285 = vpack.c.b16 %v280, %v279
    %v286 = vpack.c.b16 %v282, %v281
    %v292 = vsel %vm206, %v251, 0
    %294 = vmatprep.subr.bf16.mxu0 0
    %295 = vmatpush1.bf16.msra.mxu0 %v283
    %296 = vmatprep.subr.bf16.mxu0 0
    %297 = vmatpush1.bf16.msra.mxu0 %v284
    %298 = vmatprep.subr.bf16.mxu0 0
    %299 = vmatpush1.bf16.msra.mxu0 %v285
    %300 = vmatprep.subr.bf16.mxu0 0
    %301 = vmatpush1.bf16.msra.mxu0 %v286
    %302 = vmatprep.subr.bf16.mxu0 0
    %303 = vmatpush1.bf16.msra.mxu0 0
    %304 = vmatprep.subr.bf16.mxu0 0
    %305 = vmatpush1.bf16.msra.mxu0 0
    %306 = vmatprep.subr.bf16.mxu0 0
    %307 = vmatpush1.bf16.msra.mxu0 0
    %308 = vmatprep.subr.bf16.mxu0 0
    %309 = vmatpush1.bf16.msra.mxu0 0
    %310 = vmatprep.subr.bf16.mxu0 0
    %311 = vmatpush1.bf16.msra.mxu0 0
    %312 = vmatprep.subr.bf16.mxu0 0
    %313 = vmatpush1.bf16.msra.mxu0 0
    %314 = vmatprep.subr.bf16.mxu0 0
    %315 = vmatpush1.bf16.msra.mxu0 0
    %316 = vmatprep.subr.bf16.mxu0 0
    %317 = vmatpush1.bf16.msra.mxu0 0
    %318 = vmatprep.subr.bf16.mxu0 0
    %319 = vmatpush1.bf16.msra.mxu0 0
    %320 = vmatprep.subr.bf16.mxu0 0
    %321 = vmatpush1.bf16.msra.mxu0 0
    %322 = vmatprep.subr.bf16.mxu0 0
    %323 = vmatpush1.bf16.msra.mxu0 0
    %324 = vmatprep.subr.bf16.mxu0 0
    %325 = vmatpush1.bf16.msra.mxu0 0
    %326 = vmatprep.mubr.bf16.mxu0 0
    %327 = vmatmul.mubr.bf16.gmra.mrb[0].mxu0 %v292
    %v328 = vpop.f32.mrb[0].mxu0
    %v329 = vadd.f32 %v265, %v328
    %v330 = vpop.f32.mrb[0].mxu0
    %v331 = vpop.f32.mrb[0].mxu0
    %v332 = vpop.f32.mrb[0].mxu0
    %333 = vdwg.mxu0
    %vm334 = vcmask 15360
    %335 = vst.msk [vmem:[%s9] sm:$0xff] %vm334, %v329
    // Predicated region
    $region42: #{a_call__.1} parent=1 // pred_check
      _
    $region43: #{a_call__.1} parent=1 // pred_check_branch
      %337 = sbr.rel (0) target = $region45
    $region44: #{a_call__.1} parent=1 // pred_region
      _
    $region45: #{a_call__.1} parent=1 // pred_fallthru
      _
    // Predicated region
    $region46: #{a_call__.1} parent=1 // pred_check
      _
    $region47: #{a_call__.1} parent=1 // pred_check_branch
      %339 = sbr.rel (0) target = $region49
    $region48: #{a_call__.1} parent=1 // pred_region
      _
    $region49: #{a_call__.1} parent=1 // pred_fallthru
      _
    %340 = vsyncpa [#allocation3], 1

</llo_original>
